<compile_context>
chip_gen: v5e
topology: v5e:2x2
jax: 0.10.0
libtpu: 0.0.40
codegen_flags: <defaults>
</compile_context>

<pallas_src>
import functools

import jax
import jax.numpy as jnp
import numpy as np
from jax import lax
from jax.experimental import pallas as pl
from jax.experimental.pallas import tpu as pltpu


# ------------------------- prompt-build kernel ------------------------------

def _prompt_select_kernel(base_ref, ctx_ref, out_ref, *, n_ctx):
    # base_ref : (Ct, L, D)  prefix/suffix rows, zeros at ctx rows (constant slab)
    # ctx_ref  : (L, D)      learned ctx token-aligned at rows [1, 1+n_ctx), zeros elsewhere
    # out_ref  : (Ct, L, D)
    ct, L, d = base_ref.shape
    tok = lax.broadcasted_iota(jnp.int32, (ct, L, d), 1)
    is_ctx = jnp.logical_and(tok >= 1, tok < 1 + n_ctx)
    ctx_full = jnp.broadcast_to(ctx_ref[...][None, :, :], (ct, L, d))
    # Single unmasked full-tile store (VPU select as filler; no masked vst.msk).
    out_ref[...] = jnp.where(is_ctx, ctx_full, base_ref[...])


def _pick_cls_tile(n_cls, L, D, itemsize, max_tile_bytes=8 << 20):
    """Largest divisor of n_cls whose double-buffered (base in + out) tiles fit
    the budget, preferring a >=2-step grid so the class axis can shard across
    v7x's two TensorCores (harmless single-TC loop on v5e/v6e)."""
    divisors = [t for t in range(1, n_cls + 1) if n_cls % t == 0]
    fits = [t for t in divisors if 2 * (2 * t * L * D * itemsize) <= max_tile_bytes]
    if not fits:
        return 1
    multi = [t for t in fits if n_cls // t >= 2]
    return max(multi) if multi else max(fits)


def build_prompt(prompt_base, ctx_padded, *, n_ctx, cls_tile=None):
    """prompt_base: (n_cls, L, D) constant slab; ctx_padded: (L, D) with ctx at
    rows [1, 1+n_ctx).  Returns prompt (n_cls, L, D) == cat([prefix, ctx, suffix])."""
    n_cls, L, D = prompt_base.shape
    assert ctx_padded.shape == (L, D)
    assert D % 128 == 0, "keep D lane-dense; pad to a multiple of 128 in the wrapper"
    if cls_tile is None:
        cls_tile = _pick_cls_tile(n_cls, L, D, prompt_base.dtype.itemsize)
    assert n_cls % cls_tile == 0, "cls_tile must divide n_cls"

    kernel = functools.partial(_prompt_select_kernel, n_ctx=n_ctx)
    grid_spec = pltpu.PrefetchScalarGridSpec(
        num_scalar_prefetch=0,
        grid=(n_cls // cls_tile,),
        in_specs=[
            pl.BlockSpec((cls_tile, L, D), lambda c: (c, 0, 0)),
            pl.BlockSpec((L, D), lambda c: (0, 0)),   # constant -> stays VMEM-resident
        ],
        out_specs=pl.BlockSpec((cls_tile, L, D), lambda c: (c, 0, 0)),
    )
    return pl.pallas_call(
        kernel,
        out_shape=jax.ShapeDtypeStruct((n_cls, L, D), prompt_base.dtype),
        grid_spec=grid_spec,
        compiler_params=pltpu.CompilerParams(
            dimension_semantics=("parallel",)),       # class axis: megacore-shardable
    )(prompt_base, ctx_padded)


# --------------------- deterministic parameter setup ------------------------

def init_prompt_attention_params(key, d_model, mlp_hidden):
    """Parameter pytree matching PromptAttention(d_model).  convert_weights()
    casts Linear / MultiheadAttention weights to fp16 in PyTorch; on TPU we use
    bfloat16 (native narrow dtype).  LayerNorms / scale params stay fp32."""
    ks = jax.random.split(key, 4)
    nf = jnp.bfloat16
    return {
        "attn": {
            "in_proj_weight": (jax.random.normal(ks[0], (3 * d_model, d_model)) * 0.02).astype(nf),
            "in_proj_bias": jnp.zeros((3 * d_model,), nf),
            "out_proj_weight": (jax.random.normal(ks[1], (d_model, d_model)) * 0.02).astype(nf),
            "out_proj_bias": jnp.zeros((d_model,), nf),
        },
        "ln_pa_1_visual": {"weight": jnp.ones((d_model,), jnp.float32),
                           "bias": jnp.zeros((d_model,), jnp.float32)},
        "ln_pa_1_token": {"weight": jnp.ones((d_model,), jnp.float32),
                          "bias": jnp.zeros((d_model,), jnp.float32)},
        "mlp": {
            "c_fc1_weight": (jax.random.normal(ks[2], (mlp_hidden, d_model)) * 0.02).astype(nf),
            "c_proj_weight": (jax.random.normal(ks[3], (d_model, mlp_hidden)) * 0.02).astype(nf),
        },
        "ln_pa_2_visual": {"weight": jnp.ones((d_model,), jnp.float32),
                           "bias": jnp.zeros((d_model,), jnp.float32)},
        "scale1": 0.75 * jnp.ones((1,), jnp.float32),
        "scale2": 0.75 * jnp.ones((1,), jnp.float32),
    }


class PromptLearnerPallas:
    """JAX/Pallas analog of PromptLearner.  Token embeddings are emulated with
    deterministic randoms; CLIP encoders are not part of forward()."""

    def __init__(self, key, n_cls=4, n_ctx=4, ctx_dim=128, seq_len=16,
                 n_ctx_v=4, vis_dim=128, mlp_hidden=64):
        k = jax.random.split(key, 6)
        self.n_cls, self.n_ctx = n_cls, n_ctx
        self.seq_len, self.ctx_dim = seq_len, ctx_dim
        L_suf = seq_len - 1 - n_ctx
        dt = jnp.bfloat16

        # Learned context vectors (nn.init.normal_, std=0.02), narrow dtype.
        self.ctx = (jax.random.normal(k[0], (n_ctx, ctx_dim), jnp.float32) * 0.02).astype(dt)
        self.ctx_visual = (jax.random.normal(k[1], (n_ctx_v, vis_dim), jnp.float32) * 0.02).astype(dt)

        # token_prefix / token_suffix buffers (stand in for CLIP token embeddings).
        self.token_prefix = jax.random.normal(k[2], (n_cls, 1, ctx_dim), jnp.float32).astype(dt)
        self.token_suffix = jax.random.normal(k[3], (n_cls, L_suf, ctx_dim), jnp.float32).astype(dt)

        # Constant base slab built ONCE: prefix at row 0, suffix at rows 1+n_ctx..,
        # zeros in the ctx rows (kernel overwrites those rows via select).
        base = jnp.zeros((n_cls, seq_len, ctx_dim), dt)
        base = base.at[:, 0:1, :].set(self.token_prefix)
        base = base.at[:, 1 + n_ctx:, :].set(self.token_suffix)
        self.prompt_base = base

        # _get_clones(deepcopy) -> 12 independent clones of each PromptAttention.
        text_pa = init_prompt_attention_params(k[4], ctx_dim, mlp_hidden)
        vis_pa = init_prompt_attention_params(k[5], vis_dim, mlp_hidden)
        self.prompt_projections = [jax.tree_util.tree_map(jnp.copy, text_pa) for _ in range(12)]
        self.visual_prompts = [jax.tree_util.tree_map(jnp.copy, vis_pa) for _ in range(12)]
        # TODO(synk): text_features (clip_model_.encode_text of class prompts) needs a
        # full CLIP text encoder + tokenizer; it is unused in forward() and omitted.
        # TODO(synk): tokenized_prompts / VPT_fc are unused in forward() and omitted.

    def forward(self):
        # Token-align ctx once in the wrapper (static slice, ~1 KiB) so the kernel
        # can do a single unmasked full-tile select store; no aliased/donated
        # write-in-place kernel and exactly ONE pallas_call per forward().
        ctx_pad = jnp.zeros((self.seq_len, self.ctx_dim), self.ctx.dtype)
        ctx_pad = ctx_pad.at[1:1 + self.n_ctx, :].set(self.ctx)
        prompt = build_prompt(self.prompt_base, ctx_pad, n_ctx=self.n_ctx)
        return prompt, self.prompt_projections, self.ctx_visual, self.visual_prompts


# --------------------------------- main --------------------------------------

if __name__ == "__main__":
    key = jax.random.PRNGKey(0)
    learner = PromptLearnerPallas(key, n_cls=4, n_ctx=4, ctx_dim=128,
                                  seq_len=16, n_ctx_v=4, vis_dim=128)

    def ref_prompt(l):
        ctx_exp = jnp.broadcast_to(l.ctx[None, :, :], (l.n_cls,) + l.ctx.shape)
        return jnp.concatenate([l.token_prefix, ctx_exp, l.token_suffix], axis=1)

    # 1) forward() — pure data movement, so the Pallas result must be bit-exact.
    prompt, prompt_projections, ctx_visual, visual_prompts = learner.forward()
    prompt = jax.block_until_ready(prompt)
    np.testing.assert_allclose(
        np.asarray(prompt.astype(jnp.float32)),
        np.asarray(ref_prompt(learner).astype(jnp.float32)),
        rtol=0, atol=0)
    assert prompt.shape == (4, 16, 128) and prompt.dtype == jnp.bfloat16

    # 2) Simulate a training step: ctx changes, forward() again (no aliasing/donation,
    #    so the previous prompt remains valid).
    old_prompt = np.asarray(prompt.astype(jnp.float32))
    learner.ctx = learner.ctx + jnp.asarray(1.0, learner.ctx.dtype)
    prompt2, *_ = learner.forward()
    prompt2 = jax.block_until_ready(prompt2)
    np.testing.assert_allclose(
        np.asarray(prompt2.astype(jnp.float32)),
        np.asarray(ref_prompt(learner).astype(jnp.float32)),
        rtol=0, atol=0)
    # previous output untouched
    np.testing.assert_allclose(np.asarray(prompt.astype(jnp.float32)), old_prompt,
                               rtol=0, atol=0)

    assert len(prompt_projections) == 12 and len(visual_prompts) == 12
    assert ctx_visual.shape == (4, 128)

    print("KERNEL_OK")
</pallas_src>

<mosaic_0001>
module attributes {stable_mosaic.version = 11 : i64} {
  func.func @_prompt_select_kernel(%arg0: i32, %arg1: memref<2x16x128xbf16, #tpu.memory_space<vmem>>, %arg2: memref<16x128xbf16, #tpu.memory_space<vmem>>, %arg3: memref<2x16x128xbf16, #tpu.memory_space<vmem>>) attributes {dimension_semantics = [#tpu.dimension_semantics<parallel>], iteration_bounds = array<i64: 2>, scalar_prefetch = 0 : i64, scratch_operands = 0 : i64, tpu.core_type = #tpu.core_type<tc>, window_params = [{transform_indices = @transform_0, window_bounds = array<i64: 2, 16, 128>}, {pipeline_mode = #tpu.pipeline_mode<synchronous>, transform_indices = @transform_1, window_bounds = array<i64: 16, 128>}, {transform_indices = @transform_2, window_bounds = array<i64: 2, 16, 128>}]} {
    %0 = tpu.iota {dimensions = array<i32: 1>} : vector<2x16x128xi32>
    %c1_i32 = arith.constant 1 : i32
    %1 = vector.broadcast %c1_i32 : i32 to vector<2x16x128xi32>
    %2 = arith.cmpi sge, %0, %1 : vector<2x16x128xi32>
    %c5_i32 = arith.constant 5 : i32
    %3 = vector.broadcast %c5_i32 : i32 to vector<2x16x128xi32>
    %4 = arith.cmpi slt, %0, %3 : vector<2x16x128xi32>
    %5 = arith.andi %2, %4 : vector<2x16x128xi1>
    %c0 = arith.constant 0 : index
    %c0_0 = arith.constant 0 : index
    %6 = vector.load %arg2[%c0, %c0_0] : memref<16x128xbf16, #tpu.memory_space<vmem>>, vector<16x128xbf16>
    %7 = vector.shape_cast %6 : vector<16x128xbf16> to vector<1x16x128xbf16>
    %8 = vector.shape_cast %7 : vector<1x16x128xbf16> to vector<1x16x128xbf16>
    %9 = vector.broadcast %8 : vector<1x16x128xbf16> to vector<2x16x128xbf16>
    %c0_1 = arith.constant 0 : index
    %c0_2 = arith.constant 0 : index
    %c0_3 = arith.constant 0 : index
    %10 = vector.load %arg1[%c0_1, %c0_2, %c0_3] : memref<2x16x128xbf16, #tpu.memory_space<vmem>>, vector<2x16x128xbf16>
    %11 = arith.select %5, %9, %10 : vector<2x16x128xi1>, vector<2x16x128xbf16>
    %c0_4 = arith.constant 0 : index
    %c0_5 = arith.constant 0 : index
    %c0_6 = arith.constant 0 : index
    %12 = vector.load %arg3[%c0_4, %c0_5, %c0_6] : memref<2x16x128xbf16, #tpu.memory_space<vmem>>, vector<2x16x128xbf16>
    tpu.vector_store %arg3[%c0_4, %c0_5, %c0_6], %11 {strides = array<i32>} : memref<2x16x128xbf16, #tpu.memory_space<vmem>>, vector<2x16x128xbf16>,
    return
  }
  func.func @transform_0(%arg0: i32) -> (i32, i32, i32) {
    %c0_i32 = arith.constant 0 : i32
    %c0_i32_0 = arith.constant 0 : i32
    %c0_i32_1 = arith.constant 0 : i32
    return %arg0, %c0_i32, %c0_i32_0 : i32, i32, i32
  }
  func.func @transform_1(%arg0: i32) -> (i32, i32) {
    %c0_i32 = arith.constant 0 : i32
    %c0_i32_0 = arith.constant 0 : i32
    %c0_i32_1 = arith.constant 0 : i32
    return %c0_i32, %c0_i32_0 : i32, i32
  }
  func.func @transform_2(%arg0: i32) -> (i32, i32, i32) {
    %c0_i32 = arith.constant 0 : i32
    %c0_i32_0 = arith.constant 0 : i32
    %c0_i32_1 = arith.constant 0 : i32
    return %arg0, %c0_i32, %c0_i32_0 : i32, i32, i32
  }
}

</mosaic_0001>

<llo_original>
// kernel: tpu_custom_call.1
$region0: #{tpu_custom_call.1}
  #allocation0 [shape = 'u32[]', space=smem, size = 0x4, offset = 0x4, fixed_abs, tag = 'smem constant byte address 0x4 - core index']
  #allocation1 [shape = 'u32[72,128]{1,0:T(1,128)}', space=vmem, size = 0x9000, scoped, tag = 'internal scratch']
  %s0 = inlined_call_operand.hbm [shape: bf16[4,16,128], index: 0, kind: input, shape index: {}]
  %s1 = inlined_call_operand.hbm [shape: bf16[16,128], index: 1, kind: input, shape index: {}]
  %s2 = inlined_call_operand.hbm [shape: bf16[4,16,128], index: 2, kind: output, shape index: {}]
  %s3 = sld [smem:[#allocation0]]
  $region49: #{tpu_custom_call.1} parent=0
    _
  %s5 = ssub.s32 1, %s3
  %s6 = scalar_select 0, %s5, %s3
  $region1: #{tpu_custom_call.1} parent=0
    #allocation2 [shape = 'u8[16384]{0}', space=vmem, size = 0x4000, scoped, tag = 'input window, operand 0']
    #allocation3 [shape = 's32[2]{0}', space=sflag, size = 0x8, scoped, tag = 'scoped memory for tpu_custom_call.1']
    #allocation4 [shape = 's32[2]{0}', space=sflag, size = 0x8, scoped, tag = 'scoped memory for tpu_custom_call.1']
    #allocation5 [shape = 'u8[4096]{0}', space=vmem, size = 0x1000, scoped, tag = 'input window, operand 1, single buffered']
    #allocation6 [shape = 's32[1]{0}', space=sflag, size = 0x4, scoped, tag = 'scoped memory for tpu_custom_call.1']
    #allocation7 [shape = 'u8[16384]{0}', space=vmem, size = 0x4000, scoped, tag = 'output window, operand 0']
    %7 = vsyncpa [#allocation3], 0
    %s8 = scalar_lea.sflag [#allocation3], 1
    %9 = vsyncpa %s8, 0
    %10 = vsyncpa [#allocation6], 0
    %11 = vsyncpa [#allocation4], 0
    %s12 = scalar_lea.sflag [#allocation4], 1
    %13 = vsyncpa %s12, 0
    loop: start=0, step=1, limit=4
    $region2: #{tpu_custom_call.1} parent=1 // loop_pre_header
      _
    $region3: #{tpu_custom_call.1} parent=1 // loop_header
      %s15 = sphi 0, %s19
      %p16 = scmp.ge.s32.totalorder %s15, 4
      %s25 = sphi 0, %s27
      %s28 = sphi 0, %s25
      %s29 = sphi 0, %s28
      %s45 = sphi 0, %s29
      %s49 = sphi 0, %s49
      %s51 = sphi 0, %s49
      %s52 = sphi 0, %s51
      %s66 = sphi 0, %s52
      %s72 = sphi 0, %s74
      %s75 = sphi 0, %s72
      %s76 = sphi 0, %s75
      %s92 = sphi 0, %s76
    $region4: #{tpu_custom_call.1} parent=1 // loop_header_branch
      %18 = sbr.rel (%p16) target = $region8
    $region5: #{tpu_custom_call.1} parent=1 // loop_body
      %s20 = ssub.s32 %s15, 1
      %s21 = ssub.s32 %s15, 2
      %s22 = sadd.s32 %s15, 1
      %s23 = ssub.s32 %s15, %s22
      %p24 = scmp.eq.s32.totalorder %s23, 0
      %s26 = sadd.s32 %s25, 1
      %s27 = scalar_select %p24, %s25, %s26
      %p30 = pneg %p24
      %p31 = scmp.eq.s32.totalorder %s15, 1
      %p32 = por %p30, %p31
      %p33 = scmp.ne.s32.totalorder %s25, %s28
      %p34 = scmp.eq.s32.totalorder %s15, 0
      %p35 = por %p33, %p34
      %p36 = scmp.ne.s32.totalorder %s25, %s28
      %p37 = scmp.eq.s32.totalorder %s20, 1
      %p38 = por %p36, %p37
      %p39 = scmp.ne.s32.totalorder %s28, %s29
      %p40 = scmp.eq.s32.totalorder %s20, 0
      %p41 = por %p39, %p40
      %p42 = scmp.ne.s32.totalorder %s28, %s29
      %p43 = scmp.eq.s32.totalorder %s21, 1
      %p44 = por %p42, %p43
      %p46 = scmp.ne.s32.totalorder %s29, %s45
      %p47 = scmp.eq.s32.totalorder %s21, 0
      %p48 = por %p46, %p47
      %s50 = sadd.s32 %s49, 1
      %p53 = scmp.eq.s32.totalorder %s15, 1
      %p54 = scmp.ne.s32.totalorder %s49, %s51
      %p55 = scmp.eq.s32.totalorder %s15, 0
      %p56 = por %p54, %p55
      %p57 = scmp.ne.s32.totalorder %s49, %s51
      %p58 = scmp.eq.s32.totalorder %s20, 1
      %p59 = por %p57, %p58
      %p60 = scmp.ne.s32.totalorder %s51, %s52
      %p61 = scmp.eq.s32.totalorder %s20, 0
      %p62 = por %p60, %p61
      %p63 = scmp.ne.s32.totalorder %s51, %s52
      %p64 = scmp.eq.s32.totalorder %s21, 1
      %p65 = por %p63, %p64
      %p67 = scmp.ne.s32.totalorder %s52, %s66
      %p68 = scmp.eq.s32.totalorder %s21, 0
      %p69 = por %p67, %p68
      %s70 = ssub.s32 %s15, %s22
      %p71 = scmp.eq.s32.totalorder %s70, 0
      %s73 = sadd.s32 %s72, 1
      %s74 = scalar_select %p71, %s72, %s73
      %p77 = pneg %p71
      %p78 = scmp.eq.s32.totalorder %s15, 1
      %p79 = por %p77, %p78
      %p80 = scmp.ne.s32.totalorder %s72, %s75
      %p81 = scmp.eq.s32.totalorder %s15, 0
      %p82 = por %p80, %p81
      %p83 = scmp.ne.s32.totalorder %s72, %s75
      %p84 = scmp.eq.s32.totalorder %s20, 1
      %p85 = por %p83, %p84
      %p86 = scmp.ne.s32.totalorder %s75, %s76
      %p87 = scmp.eq.s32.totalorder %s20, 0
      %p88 = por %p86, %p87
      %p89 = scmp.ne.s32.totalorder %s75, %s76
      %p90 = scmp.eq.s32.totalorder %s21, 1
      %p91 = por %p89, %p90
      %p93 = scmp.ne.s32.totalorder %s76, %s92
      %p94 = scmp.eq.s32.totalorder %s21, 0
      %p95 = por %p93, %p94
      %p96 = scmp.le.s32.totalorder 1, %s15
      %p97 = scmp.lt.s32.totalorder %s15, 3
      %p98 = pnand %p96, %p97
      %p99 = pneg %p98
      // Predicated region
      $region9: #{tpu_custom_call.1} parent=5 // pred_check
        _
      $region10: #{tpu_custom_call.1} parent=5 // pred_check_branch
        %101 = sbr.rel (%p98) target = $region12
      $region11: #{tpu_custom_call.1} parent=5 // pred_region
        %s102 = ssub.s32 %s15, 1
        // Predicated region
        $region13: #{tpu_custom_call.1} parent=11 // pred_check
          %p103 = pneg %p62
        $region14: #{tpu_custom_call.1} parent=11 // pred_check_branch
          %105 = sbr.rel (%p103) target = $region16
        $region15: #{tpu_custom_call.1} parent=11 // pred_region
          %107 = vsyncadd [#allocation6], 0
          %s108 = sshll.u32 %s1, 4
          %s109 = int_to_ptr.hbm [resolvable:$true] %s108
          %s110 = sshll.u32 [#allocation5], 4
          %s111 = int_to_ptr.vmem [resolvable:$true] %s110
          %116 = dma.hbm_to_vmem [thread:$0]  %s109, 128, %s111, [#allocation6], 64, 64, 4
        $region16: #{tpu_custom_call.1} parent=11 // pred_fallthru
          _
      $region12: #{tpu_custom_call.1} parent=5 // pred_fallthru
        _
      %p117 = scmp.lt.s32.totalorder %s15, 2
      // Predicated region
      $region17: #{tpu_custom_call.1} parent=5 // pred_check
        %p118 = pneg %p117
      $region18: #{tpu_custom_call.1} parent=5 // pred_check_branch
        %120 = sbr.rel (%p118) target = $region20
      $region19: #{tpu_custom_call.1} parent=5 // pred_region
        // Predicated region
        $region21: #{tpu_custom_call.1} parent=19 // pred_check
          %p121 = pneg %p35
        $region22: #{tpu_custom_call.1} parent=19 // pred_check_branch
          %123 = sbr.rel (%p121) target = $region24
        $region23: #{tpu_custom_call.1} parent=19 // pred_region
          %s124 = sand.u32 %s25, 1
          %s125 = scalar_lea.sflag [#allocation3], %s124
          %s126 = sand.u32 %s25, 1
          %s127 = smul.addr %s126, 16
          %s128 = scalar_lea.vmem [#allocation2], %s127
          %s129 = smul.u32 2, %s15
          %131 = vsyncadd %s125, 0
          %s132 = smul.addr %s129, 2
          %s133 = smul.addr %s132, 4
          %s134 = scalar_lea.hbm %s0, %s133
          %s135 = sshll.u32 %s134, 4
          %s136 = int_to_ptr.hbm [resolvable:$true] %s135
          %s137 = sshll.u32 %s128, 4
          %s138 = int_to_ptr.vmem [resolvable:$true] %s137
          %143 = dma.hbm_to_vmem [thread:$0]  %s136, 256, %s138, %s125, 64, 64, 4
        $region24: #{tpu_custom_call.1} parent=19 // pred_fallthru
          _
      $region20: #{tpu_custom_call.1} parent=5 // pred_fallthru
        _
      %p144 = scmp.le.s32.totalorder 1, %s15
      %p145 = scmp.lt.s32.totalorder %s15, 3
      %p146 = pnand %p144, %p145
      %p147 = pneg %p146
      // Predicated region
      $region25: #{tpu_custom_call.1} parent=5 // pred_check
        _
      $region26: #{tpu_custom_call.1} parent=5 // pred_check_branch
        %149 = sbr.rel (%p146) target = $region28
      $region27: #{tpu_custom_call.1} parent=5 // pred_region
        %s150 = ssub.s32 %s15, 1
        %s151 = sand.u32 %s28, 1
        %s152 = scalar_lea.sflag [#allocation3], %s151
        %s153 = sand.u32 %s28, 1
        %s154 = smul.addr %s153, 16
        %s155 = scalar_lea.vmem [#allocation2], %s154
        // Predicated region
        $region29: #{tpu_custom_call.1} parent=27 // pred_check
          %p156 = pneg %p41
        $region30: #{tpu_custom_call.1} parent=27 // pred_check_branch
          %158 = sbr.rel (%p156) target = $region32
        $region31: #{tpu_custom_call.1} parent=27 // pred_region
          %160 = dma.done %s152, 256
        $region32: #{tpu_custom_call.1} parent=27 // pred_fallthru
          _
        // Predicated region
        $region33: #{tpu_custom_call.1} parent=27 // pred_check
          %p161 = pneg %p62
        $region34: #{tpu_custom_call.1} parent=27 // pred_check_branch
          %163 = sbr.rel (%p161) target = $region36
        $region35: #{tpu_custom_call.1} parent=27 // pred_region
          %165 = dma.done [#allocation6], 128
        $region36: #{tpu_custom_call.1} parent=27 // pred_fallthru
          _
        %s166 = sand.u32 %s28, 1
        %s167 = scalar_lea.sflag [#allocation3], %s166
        %s168 = sand.u32 %s28, 1
        %s169 = smul.addr %s168, 16
        %s170 = scalar_lea.vmem [#allocation2], %s169
        %p171 = pneg %p41
        %p172 = pneg %p38
        %p173 = pneg %p62
        %p174 = pneg %p59
        %p175 = pneg %p88
        %p176 = pneg %p85
        %s177 = sand.u32 %s75, 1
        %s178 = scalar_lea.sflag [#allocation4], %s177
        %s179 = sand.u32 %s75, 1
        %s180 = smul.addr %s179, 16
        %s181 = scalar_lea.vmem [#allocation7], %s180
        %s182 = smul.u32 2, %s20
        %s183 = smul.u32 2, %s20
        %v184 = vlaneseq
        %v185 = vshrl.u32 %v184, 7
        %v186 = vadd.s32 %v185, 8
        %vm187 = vcmp.ge.s32.totalorder %v185, 1
        %vm188 = vcmp.ge.s32.totalorder %v186, 1
        %vm189 = vcmp.lt.s32.totalorder %v185, 5
        %vm190 = vcmp.lt.s32.totalorder %v186, 5
        %vm191 = vmand %vm187, %vm189
        %vm192 = vmand %vm188, %vm190
        %v193 = vld [vmem:[#allocation5] sm:$0xf]
        %v194 = vld [vmem:[#allocation5 + $0x4] sm:$0xf]
        %v195 = vld [vmem:[%s155] sm:$0xf]
        %v196 = vld [vmem:[%s155 + $0x4] sm:$0xf]
        %v197 = vld [vmem:[%s155 + $0x8] sm:$0xf]
        %v198 = vld [vmem:[%s155 + $0xc] sm:$0xf]
        %vm199 = vmpackc.low %vm191, %vm191
        %vm200 = vmpackc.low %vm192, %vm192
        %v201 = vsel %vm199, %v193, %v195
        %v202 = vsel %vm200, %v194, %v196
        %v203 = vsel %vm199, %v193, %v197
        %v204 = vsel %vm200, %v194, %v198
        %205 = vst [vmem:[%s181] sm:$0xf] %v201
        %206 = vst [vmem:[%s181 + $0x4] sm:$0xf] %v202
        %207 = vst [vmem:[%s181 + $0x8] sm:$0xf] %v203
        %208 = vst [vmem:[%s181 + $0xc] sm:$0xf] %v204
        %s209 = sand.u32 %s75, 1
        %s210 = scalar_lea.sflag [#allocation4], %s209
        %s211 = sand.u32 %s75, 1
        %s212 = smul.addr %s211, 16
        %s213 = scalar_lea.vmem [#allocation7], %s212
        // Predicated region
        $region37: #{tpu_custom_call.1} parent=27 // pred_check
          %p214 = pneg %p85
        $region38: #{tpu_custom_call.1} parent=27 // pred_check_branch
          %216 = sbr.rel (%p214) target = $region40
        $region39: #{tpu_custom_call.1} parent=27 // pred_region
          %s217 = smul.u32 2, %s20
          %219 = vsyncadd %s210, 0
          %s220 = smul.addr %s217, 2
          %s221 = smul.addr %s220, 4
          %s222 = scalar_lea.hbm %s2, %s221
          %s223 = sshll.u32 %s213, 4
          %s224 = int_to_ptr.vmem [resolvable:$true] %s223
          %s225 = sshll.u32 %s222, 4
          %s226 = int_to_ptr.hbm [resolvable:$true] %s225
          %231 = dma.vmem_to_hbm [thread:$0]  %s224, 256, %s226, %s210, 64, 64, 4
        $region40: #{tpu_custom_call.1} parent=27 // pred_fallthru
          _
      $region28: #{tpu_custom_call.1} parent=5 // pred_fallthru
        _
      %p232 = scmp.le.s32.totalorder 2, %s15
      // Predicated region
      $region41: #{tpu_custom_call.1} parent=5 // pred_check
        %p233 = pneg %p232
      $region42: #{tpu_custom_call.1} parent=5 // pred_check_branch
        %235 = sbr.rel (%p233) target = $region44
      $region43: #{tpu_custom_call.1} parent=5 // pred_region
        %s236 = ssub.s32 %s15, 2
        // Predicated region
        $region45: #{tpu_custom_call.1} parent=43 // pred_check
          %p237 = pneg %p91
        $region46: #{tpu_custom_call.1} parent=43 // pred_check_branch
          %239 = sbr.rel (%p237) target = $region48
        $region47: #{tpu_custom_call.1} parent=43 // pred_region
          %s240 = sand.u32 %s76, 1
          %s241 = scalar_lea.sflag [#allocation4], %s240
          %s242 = sand.u32 %s76, 1
          %s243 = smul.addr %s242, 16
          %s244 = scalar_lea.vmem [#allocation7], %s243
          %246 = dma.done %s241, 256
        $region48: #{tpu_custom_call.1} parent=43 // pred_fallthru
          _
      $region44: #{tpu_custom_call.1} parent=5 // pred_fallthru
        _
    $region6: #{tpu_custom_call.1} parent=1 // loop_footer
      %s19 = sadd.s32 1, %s15
    $region7: #{tpu_custom_call.1} parent=1 // loop_footer_branch
      %14 = sbr.rel target = $region3
    $region8: #{tpu_custom_call.1} parent=1 // loop_exit
      _
    %247 = vsyncpa [#allocation3], 1
    %s248 = scalar_lea.sflag [#allocation3], 1
    %249 = vsyncpa %s248, 1
    %250 = vsyncpa [#allocation6], 1
    %251 = vsyncpa [#allocation4], 1
    %s252 = scalar_lea.sflag [#allocation4], 1
    %253 = vsyncpa %s252, 1

</llo_original>
